<compile_context>
chip_gen: v7x
topology: tpu7x:2x2x1
jax: 0.10.0
libtpu: 0.0.40
codegen_flags: <defaults>
</compile_context>

<pallas_src>
import functools
from typing import NamedTuple

import jax
import jax.numpy as jnp
from jax import lax
from jax.experimental import pallas as pl
from jax.experimental.pallas import tpu as pltpu


_TARGET_TILE_BYTES = 8 * 1024 * 1024   # ~8 MiB activation tile per grid step


class _ChipConfig(NamedTuple):
    vmem_limit_bytes: int
    tile_budget_bytes: int
    min_grid_steps: int


def _chip_config() -> _ChipConfig:
    """Generation-aware VMEM budgets + megacore min-grid-step policy."""
    vmem_cap = None
    try:
        info = pltpu.get_tpu_info()
        vmem_cap = int(getattr(info, "vmem_capacity_bytes", 0)) or None
    except Exception:
        vmem_cap = None
    if vmem_cap is not None and vmem_cap <= (80 << 20):
        # v7x-class: 64 MiB VMEM per TC, 2 TensorCores/chip.
        return _ChipConfig(vmem_limit_bytes=48 << 20,
                           tile_budget_bytes=28 << 20,
                           min_grid_steps=8)
    if vmem_cap is not None:
        # v5e/v6e-class: 128 MiB VMEM, single TensorCore.
        return _ChipConfig(vmem_limit_bytes=96 << 20,
                           tile_budget_bytes=56 << 20,
                           min_grid_steps=1)
    # Unknown / query failed: stay v7x-safe, no clamp.
    return _ChipConfig(vmem_limit_bytes=48 << 20,
                       tile_budget_bytes=28 << 20,
                       min_grid_steps=1)


def _rmsnorm_kernel(x_ref, w_ref, o_ref, *, eps, inv_h):
    # Pass 1: sum of squares in f32. sum * (1/H) with a compile-time constant
    # instead of a per-tile divide; rsqrt lands on the EUP slot.
    x32 = x_ref[...].astype(jnp.float32)                      # (tm, H)
    var = jnp.sum(x32 * x32, axis=-1, keepdims=True) * inv_h  # (tm, 1)
    scale = lax.rsqrt(var + eps)                              # (tm, 1) f32
    # Pass 2: fresh load/cast (avoid keeping a full f32 copy live across both
    # passes), cast back to the input dtype *before* the weight multiply
    # (torch-faithful), then promote with the weight dtype.
    normed = (x_ref[...].astype(jnp.float32) * scale).astype(x_ref.dtype)
    o_ref[...] = (w_ref[...] * normed).astype(o_ref.dtype)


def _sublane_pack(dtype) -> int:
    itemsize = jnp.dtype(dtype).itemsize
    if itemsize == 2:
        return 16
    if itemsize == 1:
        return 32
    return 8


def _choose_block_tokens(T, H, in_dtype, out_dtype, chip: _ChipConfig):
    """Byte-targeted token tile, clamped by VMEM budget and chip policy."""
    pack = _sublane_pack(in_dtype)
    in_b = jnp.dtype(in_dtype).itemsize
    out_b = jnp.dtype(out_dtype).itemsize

    # Target ~8 MiB of activation per tile so the ~0.35 us/step overhead is noise.
    bt = _TARGET_TILE_BYTES // max(H * in_b, 1)

    # Clamp by the VMEM working set: double-buffered input + output tiles plus
    # roughly one f32 temporary the compiler materializes for the upcast tile.
    bytes_per_row = H * (2 * in_b + 2 * out_b + 4)
    bt = min(bt, chip.tile_budget_bytes // max(bytes_per_row, 1))
    bt = max(pack, (bt // pack) * pack)

    # Don't exceed the (pack-rounded) token count; partial tail blocks are fine.
    t_rounded = ((T + pack - 1) // pack) * pack
    bt = min(bt, max(pack, t_rounded))

    # v7x only: keep >= min_grid_steps steps (when there is enough work) so the
    # parallel token axis shards well across both TensorCores.
    min_steps = chip.min_grid_steps
    while (min_steps > 1 and bt > pack and T >= min_steps * pack
           and pl.cdiv(T, bt) < min_steps):
        bt = max(pack, ((bt // 2) // pack) * pack)
    return bt


def rmsnorm(x, weight, eps=1e-6, *, block_tokens=None,
            cast_weight_to_input_dtype=False):
    """Pallas RMSNorm. x: (..., H), weight: (H,).

    cast_weight_to_input_dtype=True keeps bf16 inputs -> bf16 outputs (saves
    ~25% HBM write traffic) but deviates from torch's dtype promotion; default
    is torch-faithful.
    """
    orig_shape = x.shape
    H = orig_shape[-1]
    x2d = x.reshape(-1, H)
    T = x2d.shape[0]

    if cast_weight_to_input_dtype:
        w2d = weight.astype(x.dtype).reshape(1, H)
    else:
        w2d = weight.reshape(1, H)
    out_dtype = jnp.promote_types(x.dtype, w2d.dtype)

    chip = _chip_config()
    pack = _sublane_pack(x.dtype)
    if block_tokens is None:
        block_tokens = _choose_block_tokens(T, H, x.dtype, out_dtype, chip)
    else:
        block_tokens = max(pack, ((block_tokens + pack - 1) // pack) * pack)

    grid = pl.cdiv(T, block_tokens)  # partial last block handled by Pallas

    out = pl.pallas_call(
        functools.partial(_rmsnorm_kernel, eps=eps, inv_h=1.0 / H),
        out_shape=jax.ShapeDtypeStruct((T, H), out_dtype),
        grid_spec=pltpu.PrefetchScalarGridSpec(
            num_scalar_prefetch=0,
            grid=(grid,),
            in_specs=[
                pl.BlockSpec((block_tokens, H), lambda i: (i, 0)),  # activations
                pl.BlockSpec((1, H), lambda i: (0, 0)),             # weight (broadcast)
            ],
            out_specs=pl.BlockSpec((block_tokens, H), lambda i: (i, 0)),
        ),
        compiler_params=pltpu.CompilerParams(
            dimension_semantics=("parallel",),
            vmem_limit_bytes=chip.vmem_limit_bytes,
        ),
    )(x2d, w2d)

    return out.reshape(orig_shape[:-1] + (H,))


def rmsnorm_reference(x, weight, eps=1e-6):
    x_f32 = x.astype(jnp.float32)
    var = jnp.mean(x_f32 * x_f32, axis=-1, keepdims=True)
    normed = x_f32 * lax.rsqrt(var + eps)
    return weight * normed.astype(x.dtype)


if __name__ == "__main__":
    key = jax.random.PRNGKey(0)
    batch, seq, hidden = 2, 8, 32

    # Primary check: f32, shapes consistent with the module.
    x = jax.random.normal(key, (batch, seq, hidden), dtype=jnp.float32)
    weight = jnp.ones((hidden,), dtype=jnp.float32)  # nn.Parameter(torch.ones(H))

    out = jax.block_until_ready(rmsnorm(x, weight, eps=1e-6))
    ref = rmsnorm_reference(x, weight, eps=1e-6)
    assert out.shape == x.shape
    assert out.dtype == ref.dtype
    assert jnp.allclose(out, ref, atol=1e-5, rtol=1e-5), "f32 mismatch vs reference"

    # Secondary check: bf16 input, token count not a multiple of the tile
    # (exercises the partial-last-block path and cast-before-weight-mul).
    xb = jax.random.normal(jax.random.PRNGKey(1), (2, 7, hidden), dtype=jnp.bfloat16)
    out_b = jax.block_until_ready(rmsnorm(xb, weight, eps=1e-6))
    ref_b = rmsnorm_reference(xb, weight, eps=1e-6)
    assert out_b.shape == xb.shape
    assert out_b.dtype == ref_b.dtype
    assert jnp.allclose(out_b.astype(jnp.float32), ref_b.astype(jnp.float32),
                        atol=2e-2, rtol=2e-2), "bf16 mismatch vs reference"

    # Tertiary check: multi-step grid with a partial tail block (T=21, bt=8).
    xc = jax.random.normal(jax.random.PRNGKey(2), (3, 7, hidden), dtype=jnp.float32)
    out_c = jax.block_until_ready(rmsnorm(xc, weight, eps=1e-6, block_tokens=8))
    ref_c = rmsnorm_reference(xc, weight, eps=1e-6)
    assert jnp.allclose(out_c, ref_c, atol=1e-5, rtol=1e-5), "partial-block mismatch"

    print("KERNEL_OK")
</pallas_src>

<mosaic_0001>
module attributes {stable_mosaic.version = 11 : i64} {
  func.func @_rmsnorm_kernel(%arg0: i32, %arg1: memref<16x32xf32, #tpu.memory_space<vmem>>, %arg2: memref<1x32xf32, #tpu.memory_space<vmem>>, %arg3: memref<16x32xf32, #tpu.memory_space<vmem>>) attributes {dimension_semantics = [#tpu.dimension_semantics<parallel>], iteration_bounds = array<i64: 1>, scalar_prefetch = 0 : i64, scratch_operands = 0 : i64, tpu.core_type = #tpu.core_type<tc>, window_params = [{transform_indices = @transform_0, window_bounds = array<i64: 16, 32>}, {pipeline_mode = #tpu.pipeline_mode<synchronous>, transform_indices = @transform_1, window_bounds = array<i64: 1, 32>}, {transform_indices = @transform_2, window_bounds = array<i64: 16, 32>}]} {
    %c0 = arith.constant 0 : index
    %c0_0 = arith.constant 0 : index
    %0 = vector.load %arg1[%c0, %c0_0] : memref<16x32xf32, #tpu.memory_space<vmem>>, vector<16x32xf32>
    %1 = arith.mulf %0, %0 : vector<16x32xf32>
    %cst = arith.constant dense<0.000000e+00> : vector<16xf32>
    %2 = vector.multi_reduction <add>, %1, %cst [1] : vector<16x32xf32> to vector<16xf32>
    %3 = vector.shape_cast %2 : vector<16xf32> to vector<16x1xf32>
    %cst_1 = arith.constant 3.125000e-02 : f32
    %4 = vector.broadcast %cst_1 : f32 to vector<16x1xf32>
    %5 = arith.mulf %3, %4 : vector<16x1xf32>
    %cst_2 = arith.constant 9.99999997E-7 : f32
    %6 = vector.broadcast %cst_2 : f32 to vector<16x1xf32>
    %7 = arith.addf %5, %6 : vector<16x1xf32>
    %8 = math.rsqrt %7 : vector<16x1xf32>
    %c0_3 = arith.constant 0 : index
    %c0_4 = arith.constant 0 : index
    %9 = vector.load %arg1[%c0_3, %c0_4] : memref<16x32xf32, #tpu.memory_space<vmem>>, vector<16x32xf32>
    %10 = vector.broadcast %8 : vector<16x1xf32> to vector<16x32xf32>
    %11 = arith.mulf %9, %10 : vector<16x32xf32>
    %c0_5 = arith.constant 0 : index
    %c0_6 = arith.constant 0 : index
    %12 = vector.load %arg2[%c0_5, %c0_6] : memref<1x32xf32, #tpu.memory_space<vmem>>, vector<1x32xf32>
    %13 = vector.broadcast %12 : vector<1x32xf32> to vector<16x32xf32>
    %14 = arith.mulf %13, %11 : vector<16x32xf32>
    %c0_7 = arith.constant 0 : index
    %c0_8 = arith.constant 0 : index
    %15 = vector.load %arg3[%c0_7, %c0_8] : memref<16x32xf32, #tpu.memory_space<vmem>>, vector<16x32xf32>
    tpu.vector_store %arg3[%c0_7, %c0_8], %14 {strides = array<i32>} : memref<16x32xf32, #tpu.memory_space<vmem>>, vector<16x32xf32>,
    return
  }
  func.func @transform_0(%arg0: i32) -> (i32, i32) {
    %c0_i32 = arith.constant 0 : i32
    %c0_i32_0 = arith.constant 0 : i32
    return %arg0, %c0_i32 : i32, i32
  }
  func.func @transform_1(%arg0: i32) -> (i32, i32) {
    %c0_i32 = arith.constant 0 : i32
    %c0_i32_0 = arith.constant 0 : i32
    %c0_i32_1 = arith.constant 0 : i32
    return %c0_i32, %c0_i32_0 : i32, i32
  }
  func.func @transform_2(%arg0: i32) -> (i32, i32) {
    %c0_i32 = arith.constant 0 : i32
    %c0_i32_0 = arith.constant 0 : i32
    return %arg0, %c0_i32 : i32, i32
  }
}

</mosaic_0001>

<llo_original>
// kernel: tpu_custom_call.1
$region0: #{tpu_custom_call.1}
  #allocation0 [shape = 'u32[]', space=smem, size = 0x4, offset = 0x4, fixed_abs, tag = 'smem constant byte address 0x4 - core index']
  #allocation1 [shape = 'u32[144,128]{1,0:T(1,128)}', space=vmem, size = 0x12000, scoped, tag = 'internal scratch']
  %s0 = inlined_call_operand.hbm [shape: f32[16,32], index: 0, kind: input, shape index: {}]
  %s1 = inlined_call_operand.vmem [shape: f32[1,32], index: 1, kind: input, shape index: {}]
  %s2 = inlined_call_operand.hbm [shape: f32[16,32], index: 2, kind: output, shape index: {}]
  %s3 = sld [smem:[#allocation0]]
  $region22: #{tpu_custom_call.1} parent=0
    _
  %s5 = ssub.s32 1, %s3
  %s6 = scalar_select 0, %s5, %s3
  $region1: #{tpu_custom_call.1} parent=0
    #allocation2 [shape = 'u8[8192]{0}', space=vmem, size = 0x2000, scoped, tag = 'input window, operand 0, single buffered']
    #allocation3 [shape = 's32[1]{0}', space=sflag, size = 0x4, scoped, tag = 'scoped memory for tpu_custom_call.1']
    #allocation4 [shape = 's32[1]{0}', space=sflag, size = 0x4, scoped, tag = 'scoped memory for tpu_custom_call.1']
    #allocation5 [shape = 'u8[8192]{0}', space=vmem, size = 0x2000, scoped, tag = 'output window, operand 0, single buffered']
    %7 = vsyncpa [#allocation3], 0
    %8 = vsyncpa [#allocation4], 0
    // Predicated region
    $region2: #{tpu_custom_call.1} parent=1 // pred_check
      _
    $region3: #{tpu_custom_call.1} parent=1 // pred_check_branch
      %10 = sbr.rel (0) target = $region5
    $region4: #{tpu_custom_call.1} parent=1 // pred_region
      %s12 = ssub.s32 256, 256
      %13 = vsyncadd [#allocation3], %s12
      %s14 = sshll.u32 [#allocation2], 4
      %s15 = int_to_ptr.vmem [resolvable:$true] %s14
      %20 = dma.hbm_to_vmem [thread:$0]  %s0, 256, %s15, [#allocation3], 128, 128, 8
    $region5: #{tpu_custom_call.1} parent=1 // pred_fallthru
      _
    // Predicated region
    $region6: #{tpu_custom_call.1} parent=1 // pred_check
      _
    $region7: #{tpu_custom_call.1} parent=1 // pred_check_branch
      %22 = sbr.rel (0) target = $region9
    $region8: #{tpu_custom_call.1} parent=1 // pred_region
      _
    $region9: #{tpu_custom_call.1} parent=1 // pred_fallthru
      _
    // Predicated region
    $region10: #{tpu_custom_call.1} parent=1 // pred_check
      _
    $region11: #{tpu_custom_call.1} parent=1 // pred_check_branch
      %24 = sbr.rel (0) target = $region13
    $region12: #{tpu_custom_call.1} parent=1 // pred_region
      %25 = dma.done [#allocation3], 256
    $region13: #{tpu_custom_call.1} parent=1 // pred_fallthru
      _
    %v26 = vld [vmem:[#allocation2] sm:$0xff]
    %v27 = vld [vmem:[#allocation2 + $0x8] sm:$0xff]
    %v28 = vmul.f32 %v26, %v26
    %v29 = vmul.f32 %v27, %v27
    %vm30 = vcmask 261120
    %v31 = vsel %vm30, %v28, 0.0
    %32 = vadd.xlane.f32.xlu0 %v31
    %v33 = vpop.xlane.xlu0 %32
    %v34 = vsel %vm30, %v29, 0.0
    %35 = vadd.xlane.f32.xlu0 %v34
    %v36 = vpop.xlane.xlu0 %35
    %v37 = vmul.f32 %v33, 0.03125
    %v38 = vmul.f32 %v36, 0.03125
    %v39 = vadd.f32 %v37, 1e-06
    %v40 = vadd.f32 %v38, 1e-06
    %v41 = vrsqrt.pop %v39
    %v42 = vrsqrt.pop %v40
    %v43 = vmul.f32 %v26, %v41
    %v44 = vmul.f32 %v27, %v42
    %v45 = vld [vmem:[%s1] sm:$0x1]
    %v47 = vlaneseq
    %v48 = vshrl.u32 %v47, 7
    %v49 = vsub.s32 0, %v48
    %v50 = vrot.slane %v45, %v49
    %v52 = vmul.f32 %v50, %v43
    %v53 = vmul.f32 %v50, %v44
    %54 = vst.msk [vmem:[#allocation5] sm:$0xff] %vm30, %v52
    %55 = vst.msk [vmem:[#allocation5 + $0x8] sm:$0xff] %vm30, %v53
    // Predicated region
    $region14: #{tpu_custom_call.1} parent=1 // pred_check
      _
    $region15: #{tpu_custom_call.1} parent=1 // pred_check_branch
      %57 = sbr.rel (0) target = $region17
    $region16: #{tpu_custom_call.1} parent=1 // pred_region
      %s59 = ssub.s32 256, 256
      %60 = vsyncadd [#allocation4], %s59
      %s61 = sshll.u32 [#allocation5], 4
      %s62 = int_to_ptr.vmem [resolvable:$true] %s61
      %67 = dma.vmem_to_hbm [thread:$0]  %s62, 256, %s2, [#allocation4], 128, 128, 8
    $region17: #{tpu_custom_call.1} parent=1 // pred_fallthru
      _
    // Predicated region
    $region18: #{tpu_custom_call.1} parent=1 // pred_check
      _
    $region19: #{tpu_custom_call.1} parent=1 // pred_check_branch
      %69 = sbr.rel (0) target = $region21
    $region20: #{tpu_custom_call.1} parent=1 // pred_region
      %70 = dma.done [#allocation4], 256
    $region21: #{tpu_custom_call.1} parent=1 // pred_fallthru
      _
    %71 = vsyncpa [#allocation3], 1
    %72 = vsyncpa [#allocation4], 1

</llo_original>
